<compile_context>
chip_gen: v7x
topology: tpu7x:2x2x1
jax: 0.10.0
libtpu: 0.0.40
codegen_flags: <defaults>
</compile_context>

<pallas_src>
import jax
import jax.numpy as jnp
from jax.experimental import pallas as pl
from jax.experimental.pallas import tpu as pltpu


def _round_up(x, m):
    return ((x + m - 1) // m) * m


def _sublane_min(dtype):
    # f32 -> 8, bf16/f16 -> 16, int8/fp8 -> 32
    return max(8, 32 // max(jnp.dtype(dtype).itemsize, 1))


# ----------------------------- kernels ------------------------------------ #
# f32 output: accumulate directly into the (k-resident) output block.

def _kernel_f32_bias(x_ref, w_ref, b_ref, o_ref):
    k = pl.program_id(2)

    @pl.when(k == 0)
    def _():
        o_ref[...] = jnp.broadcast_to(b_ref[...].astype(jnp.float32), o_ref.shape)

    o_ref[...] += jnp.dot(x_ref[...], w_ref[...], preferred_element_type=jnp.float32)


def _kernel_f32_nobias(x_ref, w_ref, o_ref):
    k = pl.program_id(2)

    @pl.when(k == 0)
    def _():
        o_ref[...] = jnp.zeros_like(o_ref)

    o_ref[...] += jnp.dot(x_ref[...], w_ref[...], preferred_element_type=jnp.float32)


# non-f32 output (e.g. bf16): f32 VMEM accumulator, single cast in epilogue.

def _kernel_acc_bias(x_ref, w_ref, b_ref, o_ref, acc_ref):
    k = pl.program_id(2)

    @pl.when(k == 0)
    def _():
        acc_ref[...] = jnp.broadcast_to(b_ref[...].astype(jnp.float32), acc_ref.shape)

    acc_ref[...] += jnp.dot(x_ref[...], w_ref[...], preferred_element_type=jnp.float32)

    @pl.when(k == pl.num_programs(2) - 1)
    def _():
        o_ref[...] = acc_ref[...].astype(o_ref.dtype)


def _kernel_acc_nobias(x_ref, w_ref, o_ref, acc_ref):
    k = pl.program_id(2)

    @pl.when(k == 0)
    def _():
        acc_ref[...] = jnp.zeros_like(acc_ref)

    acc_ref[...] += jnp.dot(x_ref[...], w_ref[...], preferred_element_type=jnp.float32)

    @pl.when(k == pl.num_programs(2) - 1)
    def _():
        o_ref[...] = acc_ref[...].astype(o_ref.dtype)


# ----------------------------- wrapper ------------------------------------ #

def pallas_linear(x, weight, bias=None, *, force_pallas=False):
    """nn.Linear semantics: x [..., K], weight [N, K], bias [N] -> [..., N]."""
    orig_shape = x.shape
    n_input = orig_shape[-1]
    n_output = weight.shape[0]

    out_dtype = x.dtype
    weight = weight.astype(out_dtype)
    if bias is not None:
        bias = bias.astype(out_dtype)

    x2d = x.reshape(-1, n_input)
    M, K = x2d.shape
    N = n_output

    # Small-shape fallback: XLA's fused gemm beats the padded Pallas path here.
    small = (M * N * K < (1 << 20)) or (N < 128) or (K < 128)
    if small and not force_pallas:
        out = jnp.dot(x2d, weight.T, preferred_element_type=jnp.float32)
        if bias is not None:
            out = out + bias[None, :].astype(jnp.float32)
        return out.astype(out_dtype).reshape(orig_shape[:-1] + (N,))

    in_bytes = jnp.dtype(out_dtype).itemsize
    sub = _sublane_min(out_dtype)

    # One-time weight transpose -> standard (m,k)x(k,n) MXU contraction.
    w_t = weight.T  # [K, N]

    # K tiling: pad K to a lane multiple (128); pick tk as the largest multiple
    # of 128 (<= 1024) that divides the padded K -> minimal zero padding.
    Kp = _round_up(K, 128)
    q = Kp // 128
    tk_blocks = 1
    for d in range(min(q, 8), 0, -1):
        if q % d == 0:
            tk_blocks = d
            break
    tk = 128 * tk_blocks
    grid_k = Kp // tk

    tm = min(_round_up(M, sub), 512)
    tn = min(_round_up(N, 128), 512)
    grid_m = pl.cdiv(M, tm)
    grid_n = pl.cdiv(N, tn)
    # Megacore (v7x): make sure at least one "parallel" axis actually splits.
    if grid_m == 1 and grid_n == 1 and N > 128:
        tn = _round_up((N + 1) // 2, 128)
        grid_n = pl.cdiv(N, tn)
    grid = (grid_m, grid_n, grid_k)

    # Only K needs zero padding (garbage K columns would corrupt the sum);
    # ragged M/N edge blocks only touch discarded output rows/cols.
    xp = jnp.pad(x2d, ((0, 0), (0, Kp - K))) if Kp != K else x2d
    wp = jnp.pad(w_t, ((0, Kp - K), (0, 0))) if Kp != K else w_t

    x_spec = pl.BlockSpec((tm, tk), lambda i, j, k: (i, k))
    w_spec = pl.BlockSpec((tk, tn), lambda i, j, k: (k, j))
    o_spec = pl.BlockSpec((tm, tn), lambda i, j, k: (i, j))
    out_shape = jax.ShapeDtypeStruct((M, N), out_dtype)

    acc_direct = jnp.dtype(out_dtype) == jnp.dtype(jnp.float32)

    # Explicit VMEM budget (double-buffered streamed tiles + resident acc),
    # capped at 48 MiB so it is safe on v7x's 64 MiB physical VMEM.
    vmem_bytes = (2 * tm * tk * in_bytes          # x tiles
                  + 2 * tk * tn * in_bytes        # W^T tiles
                  + 2 * tm * tn * in_bytes        # output tiles
                  + (0 if acc_direct else tm * tn * 4)
                  + 2 * tn * in_bytes)            # bias tile
    vmem_limit = int(min(max(2 * vmem_bytes, 16 << 20), 48 << 20))

    compiler_params = pltpu.CompilerParams(
        dimension_semantics=("parallel", "parallel", "arbitrary"),
        vmem_limit_bytes=vmem_limit,
    )
    cost = pl.CostEstimate(
        flops=int(2 * M * Kp * N),
        transcendentals=0,
        bytes_accessed=int(M * Kp * in_bytes + Kp * N * in_bytes
                           + M * N * in_bytes
                           + (N * in_bytes if bias is not None else 0)),
    )

    if bias is not None:
        b2d = bias.reshape(1, N)
        b_spec = pl.BlockSpec((1, tn), lambda i, j, k: (0, j))
        if acc_direct:
            out = pl.pallas_call(
                _kernel_f32_bias,
                out_shape=out_shape, grid=grid,
                in_specs=[x_spec, w_spec, b_spec], out_specs=o_spec,
                compiler_params=compiler_params, cost_estimate=cost,
            )(xp, wp, b2d)
        else:
            out = pl.pallas_call(
                _kernel_acc_bias,
                out_shape=out_shape, grid=grid,
                in_specs=[x_spec, w_spec, b_spec], out_specs=o_spec,
                scratch_shapes=[pltpu.VMEM((tm, tn), jnp.float32)],
                compiler_params=compiler_params, cost_estimate=cost,
            )(xp, wp, b2d)
    else:
        if acc_direct:
            out = pl.pallas_call(
                _kernel_f32_nobias,
                out_shape=out_shape, grid=grid,
                in_specs=[x_spec, w_spec], out_specs=o_spec,
                compiler_params=compiler_params, cost_estimate=cost,
            )(xp, wp)
        else:
            out = pl.pallas_call(
                _kernel_acc_nobias,
                out_shape=out_shape, grid=grid,
                in_specs=[x_spec, w_spec], out_specs=o_spec,
                scratch_shapes=[pltpu.VMEM((tm, tn), jnp.float32)],
                compiler_params=compiler_params, cost_estimate=cost,
            )(xp, wp)

    return out.reshape(orig_shape[:-1] + (N,))


if __name__ == "__main__":
    # Small shapes consistent with the module: batch=2, n_input=32, n_output=16.
    B, n_input, n_output = 2, 32, 16

    key = jax.random.PRNGKey(0)
    kx, kw, kb = jax.random.split(key, 3)

    x = jax.random.normal(kx, (B, n_input), dtype=jnp.float32)
    bound = 1.0 / float(n_input) ** 0.5
    weight = jax.random.uniform(kw, (n_output, n_input), jnp.float32, -bound, bound)
    bias = jax.random.uniform(kb, (n_output,), jnp.float32, -bound, bound)

    # Exercise the Pallas kernel itself on the module's small shapes
    # (force_pallas bypasses the small-shape XLA fallback).
    out = pallas_linear(x, weight, bias, force_pallas=True)
    jax.block_until_ready(out)
    ref = x @ weight.T + bias
    assert out.shape == (B, n_output)
    assert jnp.allclose(out, ref, atol=1e-5, rtol=1e-5)

    # has_bias=False path.
    out_nb = pallas_linear(x, weight, None, force_pallas=True)
    jax.block_until_ready(out_nb)
    assert jnp.allclose(out_nb, x @ weight.T, atol=1e-5, rtol=1e-5)

    # Ragged M/N edges + K zero-padding + a 2-block parallel N axis.
    M2, K2, N2 = 48, 160, 192
    x2 = jax.random.normal(kx, (M2, K2), dtype=jnp.float32)
    w2 = jax.random.normal(kw, (N2, K2), dtype=jnp.float32) * 0.05
    b2 = jax.random.normal(kb, (N2,), dtype=jnp.float32)
    out2 = pallas_linear(x2, w2, b2, force_pallas=True)
    jax.block_until_ready(out2)
    ref2 = x2 @ w2.T + b2
    assert jnp.allclose(out2, ref2, atol=1e-4, rtol=1e-4)

    # Default wrapper path (small shapes take the XLA fallback) for parity.
    out_fb = pallas_linear(x, weight, bias)
    jax.block_until_ready(out_fb)
    assert jnp.allclose(out_fb, ref, atol=1e-5, rtol=1e-5)

    print("KERNEL_OK")
</pallas_src>

<mosaic_0001>
module attributes {stable_mosaic.version = 11 : i64} {
  func.func @_kernel_f32_bias(%arg0: i32, %arg1: i32, %arg2: i32, %arg3: memref<8x128xf32, #tpu.memory_space<vmem>>, %arg4: memref<128x128xf32, #tpu.memory_space<vmem>>, %arg5: memref<1x128xf32, #tpu.memory_space<vmem>>, %arg6: memref<8x128xf32, #tpu.memory_space<vmem>>) attributes {dimension_semantics = [#tpu.dimension_semantics<parallel>, #tpu.dimension_semantics<parallel>, #tpu.dimension_semantics<arbitrary>], iteration_bounds = array<i64: 1, 1, 1>, scalar_prefetch = 0 : i64, scratch_operands = 0 : i64, tpu.core_type = #tpu.core_type<tc>, window_params = [{transform_indices = @transform_0, window_bounds = array<i64: 8, 128>}, {transform_indices = @transform_1, window_bounds = array<i64: 128, 128>}, {transform_indices = @transform_2, window_bounds = array<i64: 1, 128>}, {transform_indices = @transform_3, window_bounds = array<i64: 8, 128>}]} {
    %c0_i32 = arith.constant 0 : i32
    %0 = arith.cmpi eq, %arg2, %c0_i32 : i32
    %1 = arith.extui %0 : i1 to i32
    %c0_i32_0 = arith.constant 0 : i32
    %2 = arith.cmpi ne, %1, %c0_i32_0 : i32
    scf.if %2 {
      %c0_8 = arith.constant 0 : index
      %c0_9 = arith.constant 0 : index
      %9 = vector.load %arg5[%c0_8, %c0_9] : memref<1x128xf32, #tpu.memory_space<vmem>>, vector<1x128xf32>
      %10 = vector.shape_cast %9 : vector<1x128xf32> to vector<1x128xf32>
      %11 = vector.broadcast %10 : vector<1x128xf32> to vector<8x128xf32>
      %c0_10 = arith.constant 0 : index
      %c0_11 = arith.constant 0 : index
      %12 = vector.load %arg6[%c0_10, %c0_11] : memref<8x128xf32, #tpu.memory_space<vmem>>, vector<8x128xf32>
      tpu.vector_store %arg6[%c0_10, %c0_11], %11 {strides = array<i32>} : memref<8x128xf32, #tpu.memory_space<vmem>>, vector<8x128xf32>,
    } else {
    }
    %c0 = arith.constant 0 : index
    %c0_1 = arith.constant 0 : index
    %3 = vector.load %arg6[%c0, %c0_1] : memref<8x128xf32, #tpu.memory_space<vmem>>, vector<8x128xf32>
    %c0_2 = arith.constant 0 : index
    %c0_3 = arith.constant 0 : index
    %4 = vector.load %arg3[%c0_2, %c0_3] : memref<8x128xf32, #tpu.memory_space<vmem>>, vector<8x128xf32>
    %c0_4 = arith.constant 0 : index
    %c0_5 = arith.constant 0 : index
    %5 = vector.load %arg4[%c0_4, %c0_5] : memref<128x128xf32, #tpu.memory_space<vmem>>, vector<128x128xf32>
    %cst = arith.constant dense<0.000000e+00> : vector<8x128xf32>
    %6 = tpu.matmul %4, %5, %cst {dimension_numbers = #tpu.dot_dimension_numbers<[1], [0], [0], [1], [0, 0, 1, 1], [], []>} : vector<8x128xf32>, vector<128x128xf32>, vector<8x128xf32> -> vector<8x128xf32>
    %7 = arith.addf %3, %6 : vector<8x128xf32>
    %c0_6 = arith.constant 0 : index
    %c0_7 = arith.constant 0 : index
    %8 = vector.load %arg6[%c0_6, %c0_7] : memref<8x128xf32, #tpu.memory_space<vmem>>, vector<8x128xf32>
    tpu.vector_store %arg6[%c0_6, %c0_7], %7 {strides = array<i32>} : memref<8x128xf32, #tpu.memory_space<vmem>>, vector<8x128xf32>,
    return
  }
  func.func @transform_0(%arg0: i32, %arg1: i32, %arg2: i32) -> (i32, i32) {
    %c0_i32 = arith.constant 0 : i32
    return %arg0, %arg2 : i32, i32
  }
  func.func @transform_1(%arg0: i32, %arg1: i32, %arg2: i32) -> (i32, i32) {
    %c0_i32 = arith.constant 0 : i32
    return %arg2, %arg1 : i32, i32
  }
  func.func @transform_2(%arg0: i32, %arg1: i32, %arg2: i32) -> (i32, i32) {
    %c0_i32 = arith.constant 0 : i32
    %c0_i32_0 = arith.constant 0 : i32
    return %c0_i32, %arg1 : i32, i32
  }
  func.func @transform_3(%arg0: i32, %arg1: i32, %arg2: i32) -> (i32, i32) {
    %c0_i32 = arith.constant 0 : i32
    return %arg0, %arg1 : i32, i32
  }
}

</mosaic_0001>

<llo_original>
// kernel: tpu_custom_call.1
$region0: #{tpu_custom_call.1}
  #allocation0 [shape = 'u32[]', space=smem, size = 0x4, offset = 0x4, fixed_abs, tag = 'smem constant byte address 0x4 - core index']
  #allocation1 [shape = 'u32[144,128]{1,0:T(1,128)}', space=vmem, size = 0x12000, scoped, tag = 'internal scratch']
  %s0 = inlined_call_operand.vmem [shape: f32[2,128], index: 0, kind: input, shape index: {}]
  %s1 = inlined_call_operand.vmem [shape: f32[128,16], index: 1, kind: input, shape index: {}]
  %s2 = inlined_call_operand.vmem [shape: f32[1,16], index: 2, kind: input, shape index: {}]
  %s3 = inlined_call_operand.hbm [shape: f32[2,16], index: 3, kind: output, shape index: {}]
  %s4 = sld [smem:[#allocation0]]
  $region26: #{tpu_custom_call.1} parent=0
    _
  %s6 = ssub.s32 1, %s4
  %s7 = scalar_select 0, %s6, %s4
  $region1: #{tpu_custom_call.1} parent=0
    #allocation2 [shape = 'u8[4096]{0}', space=vmem, size = 0x1000, scoped, tag = 'output window, operand 0, single buffered']
    #allocation3 [shape = 's32[1]{0}', space=sflag, size = 0x4, scoped, tag = 'scoped memory for tpu_custom_call.1']
    %8 = vsyncpa [#allocation3], 0
    // Predicated region
    $region2: #{tpu_custom_call.1} parent=1 // pred_check
      _
    $region3: #{tpu_custom_call.1} parent=1 // pred_check_branch
      %10 = sbr.rel (0) target = $region5
    $region4: #{tpu_custom_call.1} parent=1 // pred_region
      _
    $region5: #{tpu_custom_call.1} parent=1 // pred_fallthru
      _
    // Predicated region
    $region6: #{tpu_custom_call.1} parent=1 // pred_check
      _
    $region7: #{tpu_custom_call.1} parent=1 // pred_check_branch
      %12 = sbr.rel (0) target = $region9
    $region8: #{tpu_custom_call.1} parent=1 // pred_region
      _
    $region9: #{tpu_custom_call.1} parent=1 // pred_fallthru
      _
    // Predicated region
    $region10: #{tpu_custom_call.1} parent=1 // pred_check
      _
    $region11: #{tpu_custom_call.1} parent=1 // pred_check_branch
      %14 = sbr.rel (0) target = $region13
    $region12: #{tpu_custom_call.1} parent=1 // pred_region
      _
    $region13: #{tpu_custom_call.1} parent=1 // pred_fallthru
      _
    %p15 = scmp.eq.s32.totalorder 0, 0
    // Predicated region
    $region14: #{tpu_custom_call.1} parent=1 // pred_check
      %p16 = pneg %p15
    $region15: #{tpu_custom_call.1} parent=1 // pred_check_branch
      %18 = sbr.rel (%p16) target = $region17
    $region16: #{tpu_custom_call.1} parent=1 // pred_region
      %v19 = vld [vmem:[%s2] sm:$0x1]
      %v21 = vlaneseq
      %v22 = vshrl.u32 %v21, 7
      %v23 = vsub.s32 0, %v22
      %v24 = vrot.slane %v19, %v23
      %26 = vst [vmem:[#allocation2] sm:$0xff] %v24
    $region17: #{tpu_custom_call.1} parent=1 // pred_fallthru
      _
    %v27 = vld [vmem:[#allocation2] sm:$0xff]
    %v28 = vld [vmem:[%s0] sm:$0xff]
    %v29 = vld [vmem:[%s1] sm:$0xff]
    %v30 = vld [vmem:[%s1 + $0x8] sm:$0xff]
    %v31 = vld [vmem:[%s1 + $0x10] sm:$0xff]
    %v32 = vld [vmem:[%s1 + $0x18] sm:$0xff]
    %v33 = vld [vmem:[%s1 + $0x20] sm:$0xff]
    %v34 = vld [vmem:[%s1 + $0x28] sm:$0xff]
    %v35 = vld [vmem:[%s1 + $0x30] sm:$0xff]
    %v36 = vld [vmem:[%s1 + $0x38] sm:$0xff]
    %v37 = vld [vmem:[%s1 + $0x40] sm:$0xff]
    %v38 = vld [vmem:[%s1 + $0x48] sm:$0xff]
    %v39 = vld [vmem:[%s1 + $0x50] sm:$0xff]
    %v40 = vld [vmem:[%s1 + $0x58] sm:$0xff]
    %v41 = vld [vmem:[%s1 + $0x60] sm:$0xff]
    %v42 = vld [vmem:[%s1 + $0x68] sm:$0xff]
    %v43 = vld [vmem:[%s1 + $0x70] sm:$0xff]
    %v44 = vld [vmem:[%s1 + $0x78] sm:$0xff]
    %45 = vmatprep.subr.mxu0 0.0
    %46 = vmatpush1.msra.mxu0 %v29
    %47 = vmatprep.subr.mxu0 0.0
    %48 = vmatpush1.msra.mxu0 %v30
    %49 = vmatprep.subr.mxu0 0.0
    %50 = vmatpush1.msra.mxu0 %v31
    %51 = vmatprep.subr.mxu0 0.0
    %52 = vmatpush1.msra.mxu0 %v32
    %53 = vmatprep.subr.mxu0 0.0
    %54 = vmatpush1.msra.mxu0 %v33
    %55 = vmatprep.subr.mxu0 0.0
    %56 = vmatpush1.msra.mxu0 %v34
    %57 = vmatprep.subr.mxu0 0.0
    %58 = vmatpush1.msra.mxu0 %v35
    %59 = vmatprep.subr.mxu0 0.0
    %60 = vmatpush1.msra.mxu0 %v36
    %61 = vmatprep.subr.mxu0 0.0
    %62 = vmatpush1.msra.mxu0 %v37
    %63 = vmatprep.subr.mxu0 0.0
    %64 = vmatpush1.msra.mxu0 %v38
    %65 = vmatprep.subr.mxu0 0.0
    %66 = vmatpush1.msra.mxu0 %v39
    %67 = vmatprep.subr.mxu0 0.0
    %68 = vmatpush1.msra.mxu0 %v40
    %69 = vmatprep.subr.mxu0 0.0
    %70 = vmatpush1.msra.mxu0 %v41
    %71 = vmatprep.subr.mxu0 0.0
    %72 = vmatpush1.msra.mxu0 %v42
    %73 = vmatprep.subr.mxu0 0.0
    %74 = vmatpush1.msra.mxu0 %v43
    %75 = vmatprep.subr.mxu0 0.0
    %76 = vmatpush1.msra.mxu0 %v44
    %77 = vmatprep.subr.mxu0 0.0
    %78 = vmatpush1.msra.mxu0 0.0
    %79 = vmatprep.subr.mxu0 0.0
    %80 = vmatpush1.msra.mxu0 0.0
    %81 = vmatprep.subr.mxu0 0.0
    %82 = vmatpush1.msra.mxu0 0.0
    %83 = vmatprep.subr.mxu0 0.0
    %84 = vmatpush1.msra.mxu0 0.0
    %85 = vmatprep.subr.mxu0 0.0
    %86 = vmatpush1.msra.mxu0 0.0
    %87 = vmatprep.subr.mxu0 0.0
    %88 = vmatpush1.msra.mxu0 0.0
    %89 = vmatprep.subr.mxu0 0.0
    %90 = vmatpush1.msra.mxu0 0.0
    %91 = vmatprep.subr.mxu0 0.0
    %92 = vmatpush1.msra.mxu0 0.0
    %93 = vmatprep.subr.mxu0 0.0
    %94 = vmatpush1.msra.mxu0 0.0
    %95 = vmatprep.subr.mxu0 0.0
    %96 = vmatpush1.msra.mxu0 0.0
    %97 = vmatprep.subr.mxu0 0.0
    %98 = vmatpush1.msra.mxu0 0.0
    %99 = vmatprep.subr.mxu0 0.0
    %100 = vmatpush1.msra.mxu0 0.0
    %101 = vmatprep.subr.mxu0 0.0
    %102 = vmatpush1.msra.mxu0 0.0
    %103 = vmatprep.subr.mxu0 0.0
    %104 = vmatpush1.msra.mxu0 0.0
    %105 = vmatprep.subr.mxu0 0.0
    %106 = vmatpush1.msra.mxu0 0.0
    %107 = vmatprep.subr.mxu0 0.0
    %108 = vmatpush1.msra.mxu0 0.0
    %109 = vmatprep.mubr.f32.mxu0 0.0
    %110 = vmatmul.mubr.f32.gmra.mrb[0].mxu0 %v28
    %v111 = vpop.f32.mrb[0].mxu0
    %v112 = vadd.f32 0.0, %v111
    %v113 = vpop.f32.mrb[0].mxu0
    %114 = vdwg.mxu0
    %v115 = vadd.f32 %v27, %v112
    %116 = vst [vmem:[#allocation2] sm:$0xff] %v115
    // Predicated region
    $region18: #{tpu_custom_call.1} parent=1 // pred_check
      _
    $region19: #{tpu_custom_call.1} parent=1 // pred_check_branch
      %118 = sbr.rel (0) target = $region21
    $region20: #{tpu_custom_call.1} parent=1 // pred_region
      %s120 = ssub.s32 128, 32
      %121 = vsyncadd [#allocation3], %s120
      %s122 = sshll.u32 [#allocation2], 4
      %s123 = int_to_ptr.vmem [resolvable:$true] %s122
      %128 = dma.vmem_to_hbm [thread:$0]  %s123, 32, %s3, [#allocation3], 32, 32, 2
    $region21: #{tpu_custom_call.1} parent=1 // pred_fallthru
      _
    // Predicated region
    $region22: #{tpu_custom_call.1} parent=1 // pred_check
      _
    $region23: #{tpu_custom_call.1} parent=1 // pred_check_branch
      %130 = sbr.rel (0) target = $region25
    $region24: #{tpu_custom_call.1} parent=1 // pred_region
      %131 = dma.done [#allocation3], 128
    $region25: #{tpu_custom_call.1} parent=1 // pred_fallthru
      _
    %132 = vsyncpa [#allocation3], 1

</llo_original>
